<compile_context>
chip_gen: v7x
topology: tpu7x:2x2x1
jax: 0.10.0
libtpu: 0.0.40
codegen_flags: <defaults>
</compile_context>

<pallas_src>
import jax
import jax.numpy as jnp
from jax.experimental import pallas as pl
from jax.experimental.pallas import tpu as pltpu


def _round_up(x, m):
    return (x + m - 1) // m * m


# ----------------------------------------------------------------------------
# Kernel
# ----------------------------------------------------------------------------
def _make_kernel(num_features, n_labels, n_ft, lane_w, r1p, r2p, eps=1e-5):
    """Kernel body for one independent (B, num_features) router invocation.

    Data orientation inside the kernel: features on sublanes, batch on lanes,
    so BatchNorm statistics are lane reductions and the final Linear(->1) is a
    VPU multiply + sublane reduce (no 1-column MXU matmul).
    """
    c = lane_w  # first lane of the packed vector columns

    def kernel(x_ref, w_ref, out_ref):
        # x_ref block: (1, B, num_features);  w_ref: full (rows, lane_w + 8) slab.
        x = x_ref[0].astype(jnp.float32)                       # (B, F)

        # Static slices of the packed slab (row starts are 8-aligned; zero cost).
        W1 = w_ref[0:n_labels, 0:num_features]                 # (n_labels, F)
        W2 = w_ref[r1p:r1p + n_ft, 0:n_labels]                 # (n_ft, n_labels)
        W3 = w_ref[r2p:r2p + n_labels, 0:n_ft]                 # (n_labels, n_ft)

        g1, be1 = w_ref[0:n_labels, c + 0:c + 1], w_ref[0:n_labels, c + 1:c + 2]
        g2, be2 = w_ref[0:n_ft, c + 2:c + 3],     w_ref[0:n_ft, c + 3:c + 4]
        g3, be3 = w_ref[0:n_labels, c + 4:c + 5], w_ref[0:n_labels, c + 5:c + 6]
        w4c = w_ref[0:n_labels, c + 6:c + 7]                   # (n_labels, 1)
        b4 = w_ref[0:1, c + 7:c + 8]                           # (1, 1)

        def bn_relu(h, gamma, beta):
            # Training-mode BatchNorm1d over the batch (= lane) axis, biased
            # variance, two-pass form (non-negative; reuses h - mean).
            mean = jnp.mean(h, axis=1, keepdims=True)
            d = h - mean
            var = jnp.mean(d * d, axis=1, keepdims=True)
            xhat = d * jax.lax.rsqrt(var + eps)
            return jnp.maximum(xhat * gamma + beta, 0.0)

        # Linear(F -> n_labels) [bias dead under training BN] + BN + ReLU.
        # Contract W1 and x on their lane axes: (n_labels, F) x (B, F) -> (n_labels, B).
        h = jax.lax.dot_general(W1, x, (((1,), (1,)), ((), ())),
                                preferred_element_type=jnp.float32)
        h = bn_relu(h, g1, be1)
        # Linear(n_labels -> n_ft) + BN + ReLU.
        h = jnp.dot(W2, h, preferred_element_type=jnp.float32)
        h = bn_relu(h, g2, be2)
        # Linear(n_ft -> n_labels) + BN + ReLU.
        h = jnp.dot(W3, h, preferred_element_type=jnp.float32)
        h = bn_relu(h, g3, be3)

        # Linear(n_labels -> 1) + Sigmoid: VPU multiply + sublane reduce.
        z = jnp.sum(h * w4c, axis=0, keepdims=True) + b4       # (1, B)
        out_ref[0] = jax.nn.sigmoid(z)

    return kernel


# ----------------------------------------------------------------------------
# Parameter construction / packing (host side)
# ----------------------------------------------------------------------------
def make_disk_router_params(key, num_features, n_labels, n_ft=64):
    """PyTorch-layout parameters: Linear weights are (out, in), biases (out,)."""
    def linear(k, fan_in, fan_out):
        kw, kb = jax.random.split(k)
        bound = 1.0 / jnp.sqrt(jnp.float32(fan_in))
        W = jax.random.uniform(kw, (fan_out, fan_in), jnp.float32, -bound, bound)
        b = jax.random.uniform(kb, (fan_out,), jnp.float32, -bound, bound)
        return W, b

    ks = jax.random.split(key, 4)
    W1, b1 = linear(ks[0], num_features, n_labels)
    W2, b2 = linear(ks[1], n_labels, n_ft)
    W3, b3 = linear(ks[2], n_ft, n_labels)
    W4, b4 = linear(ks[3], n_labels, 1)

    g1, be1 = jnp.ones((n_labels,), jnp.float32), jnp.zeros((n_labels,), jnp.float32)
    g2, be2 = jnp.ones((n_ft,), jnp.float32), jnp.zeros((n_ft,), jnp.float32)
    g3, be3 = jnp.ones((n_labels,), jnp.float32), jnp.zeros((n_labels,), jnp.float32)

    return (W1, b1, W2, b2, W3, b3, W4, b4, g1, be1, g2, be2, g3, be3)


def pack_params(params, num_features, n_labels, n_ft=64):
    """Pack all parameters into ONE VMEM-friendly slab (a single DMA).

    Layout: (rows, lane_w + 8) f32 where
      rows [0, n_labels)          lanes [0, num_features)  -> W1
      rows [r1p, r1p + n_ft)      lanes [0, n_labels)      -> W2
      rows [r2p, r2p + n_labels)  lanes [0, n_ft)          -> W3
      lanes [lane_w, lane_w+8): columns g1, be1, g2, be2, g3, be3, W4^T, b4
    Row offsets r1p/r2p are padded to multiples of 8 so in-kernel static
    sublane slices land on (8, 128) tile boundaries.

    b1/b2/b3 are intentionally dropped: under TRAINING-mode BatchNorm the mean
    subtraction cancels a constant bias.  Do not reuse this packing for
    eval-mode (running-stats) BatchNorm.
    """
    (W1, _b1, W2, _b2, W3, _b3, W4, b4, g1, be1, g2, be2, g3, be3) = params

    lane_w = max(num_features, n_labels, n_ft)
    r1p = _round_up(n_labels, 8)
    r2p = r1p + _round_up(n_ft, 8)
    r3p = r2p + _round_up(n_labels, 8)
    rows = max(r3p, _round_up(max(n_labels, n_ft), 8))
    lanes = lane_w + 8

    slab = jnp.zeros((rows, lanes), jnp.float32)
    slab = slab.at[0:n_labels, 0:num_features].set(W1.astype(jnp.float32))
    slab = slab.at[r1p:r1p + n_ft, 0:n_labels].set(W2.astype(jnp.float32))
    slab = slab.at[r2p:r2p + n_labels, 0:n_ft].set(W3.astype(jnp.float32))

    c = lane_w
    slab = slab.at[0:n_labels, c + 0].set(g1)
    slab = slab.at[0:n_labels, c + 1].set(be1)
    slab = slab.at[0:n_ft, c + 2].set(g2)
    slab = slab.at[0:n_ft, c + 3].set(be2)
    slab = slab.at[0:n_labels, c + 4].set(g3)
    slab = slab.at[0:n_labels, c + 5].set(be3)
    slab = slab.at[0:n_labels, c + 6].set(W4.reshape(-1))
    slab = slab.at[0:1, c + 7].set(b4.reshape(-1))
    return slab


# ----------------------------------------------------------------------------
# Wrappers
# ----------------------------------------------------------------------------
def disk_router_forward_stacked(t_ft_stack, slab, *, n_labels, n_ft=64):
    """Run G independent DiSK_Router invocations in one pallas_call.

    t_ft_stack: (G, B, num_features).  Returns (G, B, 1).  BatchNorm
    statistics are computed per slice, so each slice matches the module.
    """
    G, B, num_features = t_ft_stack.shape
    rows, lanes = slab.shape
    lane_w = lanes - 8
    r1p = _round_up(n_labels, 8)
    r2p = r1p + _round_up(n_ft, 8)

    kernel = _make_kernel(num_features, n_labels, n_ft, lane_w, r1p, r2p)

    # Advisory cost for XLA's scheduler (tiny call -> overlap with neighbors).
    flops = 2 * G * B * (num_features * n_labels + n_labels * n_ft
                         + n_ft * n_labels + n_labels)
    transcendentals = G * (2 * n_labels + n_ft + B)
    bytes_accessed = 4 * (G * B * num_features + rows * lanes + G * B)

    out = pl.pallas_call(
        kernel,
        out_shape=jax.ShapeDtypeStruct((G, 1, B), jnp.float32),
        grid=(G,),
        in_specs=[
            pl.BlockSpec((1, B, num_features), lambda g: (g, 0, 0)),
            pl.BlockSpec((rows, lanes), lambda g: (0, 0)),   # resident across grid
        ],
        out_specs=pl.BlockSpec((1, 1, B), lambda g: (g, 0, 0)),
        compiler_params=pltpu.CompilerParams(
            dimension_semantics=("parallel",)),               # 2nd TC on v7x
        cost_estimate=pl.CostEstimate(
            flops=flops,
            transcendentals=transcendentals,
            bytes_accessed=bytes_accessed),
    )(t_ft_stack, slab)

    # (G, 1, B) -> (G, B, 1): free layout plumbing, preserves module contract.
    return jnp.swapaxes(out, 1, 2)


def disk_router_forward(t_logits, t_ft, slab, *, n_labels, n_ft=64):
    """Pallas implementation of DiSK_Router.forward.

    t_logits is ignored (exactly as in the PyTorch module); returns the
    sigmoid routing score with shape (B, 1).
    """
    del t_logits  # unused by the reference module
    B, _ = t_ft.shape
    out = disk_router_forward_stacked(t_ft[None], slab,
                                      n_labels=n_labels, n_ft=n_ft)
    return out.reshape(B, 1)


# ----------------------------------------------------------------------------
# Pure-JAX reference (faithful to the PyTorch module, biases included)
# ----------------------------------------------------------------------------
def _reference_forward(t_ft, params, eps=1e-5):
    (W1, b1, W2, b2, W3, b3, W4, b4, g1, be1, g2, be2, g3, be3) = params

    def bn_relu(x, g, b):
        mean = jnp.mean(x, axis=0, keepdims=True)
        var = jnp.mean((x - mean) ** 2, axis=0, keepdims=True)
        return jnp.maximum((x - mean) * jax.lax.rsqrt(var + eps) * g + b, 0.0)

    x = t_ft.astype(jnp.float32)
    h = x @ W1.T + b1
    h = bn_relu(h, g1, be1)
    h = h @ W2.T + b2
    h = bn_relu(h, g2, be2)
    h = h @ W3.T + b3
    h = bn_relu(h, g3, be3)
    return jax.nn.sigmoid(h @ W4.T + b4)


if __name__ == "__main__":
    # Small shapes consistent with the module's forward:
    #   t_ft:     (batch, num_features)
    #   t_logits: (batch, n_labels)   -- unused
    batch = 8
    num_features = 32
    n_labels = 16
    n_ft = 64
    G = 4  # stacked independent invocations (grid test)

    key = jax.random.PRNGKey(0)
    k_ft, k_logits, k_params, k_stack = jax.random.split(key, 4)

    t_ft = jax.random.normal(k_ft, (batch, num_features), jnp.float32)
    t_logits = jax.random.normal(k_logits, (batch, n_labels), jnp.float32)

    raw_params = make_disk_router_params(k_params, num_features, n_labels, n_ft)
    slab = pack_params(raw_params, num_features, n_labels, n_ft)

    # --- Module-contract path: single (B, F) input ---------------------------
    out = disk_router_forward(t_logits, t_ft, slab, n_labels=n_labels, n_ft=n_ft)
    out = jax.block_until_ready(out)
    ref = _reference_forward(t_ft, raw_params)
    assert out.shape == (batch, 1), out.shape
    assert jnp.allclose(out, ref, atol=2e-5, rtol=2e-5), (out, ref)

    # --- Grid path: G independent invocations in one pallas_call -------------
    t_ft_stack = jax.random.normal(k_stack, (G, batch, num_features), jnp.float32)
    out_stack = disk_router_forward_stacked(t_ft_stack, slab,
                                            n_labels=n_labels, n_ft=n_ft)
    out_stack = jax.block_until_ready(out_stack)
    assert out_stack.shape == (G, batch, 1), out_stack.shape
    for g in range(G):
        ref_g = _reference_forward(t_ft_stack[g], raw_params)
        assert jnp.allclose(out_stack[g], ref_g, atol=2e-5, rtol=2e-5), g

    print("KERNEL_OK")
</pallas_src>

<mosaic_0001>
module attributes {stable_mosaic.version = 11 : i64} {
  func.func @kernel(%arg0: i32, %arg1: memref<1x8x32xf32, #tpu.memory_space<vmem>>, %arg2: memref<96x72xf32, #tpu.memory_space<vmem>>, %arg3: memref<1x1x8xf32, #tpu.memory_space<vmem>>) attributes {dimension_semantics = [#tpu.dimension_semantics<parallel>], iteration_bounds = array<i64: 1>, scalar_prefetch = 0 : i64, scratch_operands = 0 : i64, tpu.core_type = #tpu.core_type<tc>, window_params = [{transform_indices = @transform_0, window_bounds = array<i64: 1, 8, 32>}, {pipeline_mode = #tpu.pipeline_mode<synchronous>, transform_indices = @transform_1, window_bounds = array<i64: 96, 72>}, {transform_indices = @transform_2, window_bounds = array<i64: 1, 1, 8>}]} {
    %c0 = arith.constant 0 : index
    %c0_0 = arith.constant 0 : index
    %c0_1 = arith.constant 0 : index
    %0 = vector.load %arg1[%c0, %c0_0, %c0_1] : memref<1x8x32xf32, #tpu.memory_space<vmem>>, vector<1x8x32xf32>
    %1 = vector.shape_cast %0 : vector<1x8x32xf32> to vector<8x32xf32>
    %c0_2 = arith.constant 0 : index
    %c0_3 = arith.constant 0 : index
    %2 = vector.load %arg2[%c0_2, %c0_3] : memref<96x72xf32, #tpu.memory_space<vmem>>, vector<16x32xf32>
    %c16 = arith.constant 16 : index
    %c0_4 = arith.constant 0 : index
    %3 = vector.load %arg2[%c16, %c0_4] : memref<96x72xf32, #tpu.memory_space<vmem>>, vector<64x16xf32>
    %c80 = arith.constant 80 : index
    %c0_5 = arith.constant 0 : index
    %4 = vector.load %arg2[%c80, %c0_5] : memref<96x72xf32, #tpu.memory_space<vmem>>, vector<16x64xf32>
    %c0_6 = arith.constant 0 : index
    %c64 = arith.constant 64 : index
    %5 = vector.load %arg2[%c0_6, %c64] : memref<96x72xf32, #tpu.memory_space<vmem>>, vector<16x1xf32>
    %c0_7 = arith.constant 0 : index
    %c65 = arith.constant 65 : index
    %6 = vector.load %arg2[%c0_7, %c65] : memref<96x72xf32, #tpu.memory_space<vmem>>, vector<16x1xf32>
    %c0_8 = arith.constant 0 : index
    %c66 = arith.constant 66 : index
    %7 = vector.load %arg2[%c0_8, %c66] : memref<96x72xf32, #tpu.memory_space<vmem>>, vector<64x1xf32>
    %c0_9 = arith.constant 0 : index
    %c67 = arith.constant 67 : index
    %8 = vector.load %arg2[%c0_9, %c67] : memref<96x72xf32, #tpu.memory_space<vmem>>, vector<64x1xf32>
    %c0_10 = arith.constant 0 : index
    %c68 = arith.constant 68 : index
    %9 = vector.load %arg2[%c0_10, %c68] : memref<96x72xf32, #tpu.memory_space<vmem>>, vector<16x1xf32>
    %c0_11 = arith.constant 0 : index
    %c69 = arith.constant 69 : index
    %10 = vector.load %arg2[%c0_11, %c69] : memref<96x72xf32, #tpu.memory_space<vmem>>, vector<16x1xf32>
    %c0_12 = arith.constant 0 : index
    %c70 = arith.constant 70 : index
    %11 = vector.load %arg2[%c0_12, %c70] : memref<96x72xf32, #tpu.memory_space<vmem>>, vector<16x1xf32>
    %c0_13 = arith.constant 0 : index
    %c71 = arith.constant 71 : index
    %12 = vector.load %arg2[%c0_13, %c71] : memref<96x72xf32, #tpu.memory_space<vmem>>, vector<1x1xf32>
    %cst = arith.constant dense<0.000000e+00> : vector<16x8xf32>
    %13 = tpu.matmul %2, %1, %cst {dimension_numbers = #tpu.dot_dimension_numbers<[1], [1], [0], [0], [0, 0, 1, 0], [], []>} : vector<16x32xf32>, vector<8x32xf32>, vector<16x8xf32> -> vector<16x8xf32>
    %cst_14 = arith.constant dense<0.000000e+00> : vector<16xf32>
    %14 = vector.multi_reduction <add>, %13, %cst_14 [1] : vector<16x8xf32> to vector<16xf32>
    %15 = vector.shape_cast %14 : vector<16xf32> to vector<16x1xf32>
    %cst_15 = arith.constant 8.000000e+00 : f32
    %16 = vector.broadcast %cst_15 : f32 to vector<16x1xf32>
    %17 = arith.divf %15, %16 : vector<16x1xf32>
    %18 = vector.broadcast %17 : vector<16x1xf32> to vector<16x8xf32>
    %19 = arith.subf %13, %18 : vector<16x8xf32>
    %20 = arith.mulf %19, %19 : vector<16x8xf32>
    %cst_16 = arith.constant dense<0.000000e+00> : vector<16xf32>
    %21 = vector.multi_reduction <add>, %20, %cst_16 [1] : vector<16x8xf32> to vector<16xf32>
    %22 = vector.shape_cast %21 : vector<16xf32> to vector<16x1xf32>
    %cst_17 = arith.constant 8.000000e+00 : f32
    %23 = vector.broadcast %cst_17 : f32 to vector<16x1xf32>
    %24 = arith.divf %22, %23 : vector<16x1xf32>
    %cst_18 = arith.constant 9.99999974E-6 : f32
    %25 = vector.broadcast %cst_18 : f32 to vector<16x1xf32>
    %26 = arith.addf %24, %25 : vector<16x1xf32>
    %27 = math.rsqrt %26 : vector<16x1xf32>
    %28 = vector.broadcast %27 : vector<16x1xf32> to vector<16x8xf32>
    %29 = arith.mulf %19, %28 : vector<16x8xf32>
    %30 = vector.broadcast %5 : vector<16x1xf32> to vector<16x8xf32>
    %31 = arith.mulf %29, %30 : vector<16x8xf32>
    %32 = vector.broadcast %6 : vector<16x1xf32> to vector<16x8xf32>
    %33 = arith.addf %31, %32 : vector<16x8xf32>
    %cst_19 = arith.constant 0.000000e+00 : f32
    %34 = vector.broadcast %cst_19 : f32 to vector<16x8xf32>
    %35 = arith.maximumf %33, %34 : vector<16x8xf32>
    %cst_20 = arith.constant dense<0.000000e+00> : vector<64x8xf32>
    %36 = tpu.matmul %3, %35, %cst_20 {dimension_numbers = #tpu.dot_dimension_numbers<[1], [0], [0], [1], [0, 0, 1, 1], [], []>} : vector<64x16xf32>, vector<16x8xf32>, vector<64x8xf32> -> vector<64x8xf32>
    %cst_21 = arith.constant dense<0.000000e+00> : vector<64xf32>
    %37 = vector.multi_reduction <add>, %36, %cst_21 [1] : vector<64x8xf32> to vector<64xf32>
    %38 = vector.shape_cast %37 : vector<64xf32> to vector<64x1xf32>
    %cst_22 = arith.constant 8.000000e+00 : f32
    %39 = vector.broadcast %cst_22 : f32 to vector<64x1xf32>
    %40 = arith.divf %38, %39 : vector<64x1xf32>
    %41 = vector.broadcast %40 : vector<64x1xf32> to vector<64x8xf32>
    %42 = arith.subf %36, %41 : vector<64x8xf32>
    %43 = arith.mulf %42, %42 : vector<64x8xf32>
    %cst_23 = arith.constant dense<0.000000e+00> : vector<64xf32>
    %44 = vector.multi_reduction <add>, %43, %cst_23 [1] : vector<64x8xf32> to vector<64xf32>
    %45 = vector.shape_cast %44 : vector<64xf32> to vector<64x1xf32>
    %cst_24 = arith.constant 8.000000e+00 : f32
    %46 = vector.broadcast %cst_24 : f32 to vector<64x1xf32>
    %47 = arith.divf %45, %46 : vector<64x1xf32>
    %cst_25 = arith.constant 9.99999974E-6 : f32
    %48 = vector.broadcast %cst_25 : f32 to vector<64x1xf32>
    %49 = arith.addf %47, %48 : vector<64x1xf32>
    %50 = math.rsqrt %49 : vector<64x1xf32>
    %51 = vector.broadcast %50 : vector<64x1xf32> to vector<64x8xf32>
    %52 = arith.mulf %42, %51 : vector<64x8xf32>
    %53 = vector.broadcast %7 : vector<64x1xf32> to vector<64x8xf32>
    %54 = arith.mulf %52, %53 : vector<64x8xf32>
    %55 = vector.broadcast %8 : vector<64x1xf32> to vector<64x8xf32>
    %56 = arith.addf %54, %55 : vector<64x8xf32>
    %cst_26 = arith.constant 0.000000e+00 : f32
    %57 = vector.broadcast %cst_26 : f32 to vector<64x8xf32>
    %58 = arith.maximumf %56, %57 : vector<64x8xf32>
    %cst_27 = arith.constant dense<0.000000e+00> : vector<16x8xf32>
    %59 = tpu.matmul %4, %58, %cst_27 {dimension_numbers = #tpu.dot_dimension_numbers<[1], [0], [0], [1], [0, 0, 1, 1], [], []>} : vector<16x64xf32>, vector<64x8xf32>, vector<16x8xf32> -> vector<16x8xf32>
    %cst_28 = arith.constant dense<0.000000e+00> : vector<16xf32>
    %60 = vector.multi_reduction <add>, %59, %cst_28 [1] : vector<16x8xf32> to vector<16xf32>
    %61 = vector.shape_cast %60 : vector<16xf32> to vector<16x1xf32>
    %cst_29 = arith.constant 8.000000e+00 : f32
    %62 = vector.broadcast %cst_29 : f32 to vector<16x1xf32>
    %63 = arith.divf %61, %62 : vector<16x1xf32>
    %64 = vector.broadcast %63 : vector<16x1xf32> to vector<16x8xf32>
    %65 = arith.subf %59, %64 : vector<16x8xf32>
    %66 = arith.mulf %65, %65 : vector<16x8xf32>
    %cst_30 = arith.constant dense<0.000000e+00> : vector<16xf32>
    %67 = vector.multi_reduction <add>, %66, %cst_30 [1] : vector<16x8xf32> to vector<16xf32>
    %68 = vector.shape_cast %67 : vector<16xf32> to vector<16x1xf32>
    %cst_31 = arith.constant 8.000000e+00 : f32
    %69 = vector.broadcast %cst_31 : f32 to vector<16x1xf32>
    %70 = arith.divf %68, %69 : vector<16x1xf32>
    %cst_32 = arith.constant 9.99999974E-6 : f32
    %71 = vector.broadcast %cst_32 : f32 to vector<16x1xf32>
    %72 = arith.addf %70, %71 : vector<16x1xf32>
    %73 = math.rsqrt %72 : vector<16x1xf32>
    %74 = vector.broadcast %73 : vector<16x1xf32> to vector<16x8xf32>
    %75 = arith.mulf %65, %74 : vector<16x8xf32>
    %76 = vector.broadcast %9 : vector<16x1xf32> to vector<16x8xf32>
    %77 = arith.mulf %75, %76 : vector<16x8xf32>
    %78 = vector.broadcast %10 : vector<16x1xf32> to vector<16x8xf32>
    %79 = arith.addf %77, %78 : vector<16x8xf32>
    %cst_33 = arith.constant 0.000000e+00 : f32
    %80 = vector.broadcast %cst_33 : f32 to vector<16x8xf32>
    %81 = arith.maximumf %79, %80 : vector<16x8xf32>
    %82 = vector.broadcast %11 : vector<16x1xf32> to vector<16x8xf32>
    %83 = arith.mulf %81, %82 : vector<16x8xf32>
    %cst_34 = arith.constant dense<0.000000e+00> : vector<8xf32>
    %84 = vector.multi_reduction <add>, %83, %cst_34 [0] : vector<16x8xf32> to vector<8xf32>
    %85 = vector.shape_cast %84 : vector<8xf32> to vector<1x8xf32>
    %86 = vector.broadcast %12 : vector<1x1xf32> to vector<1x8xf32>
    %87 = arith.addf %85, %86 : vector<1x8xf32>
    %88 = arith.negf %87 : vector<1x8xf32>
    %89 = math.exp %88 : vector<1x8xf32>
    %cst_35 = arith.constant 1.000000e+00 : f32
    %90 = vector.broadcast %cst_35 : f32 to vector<1x8xf32>
    %91 = arith.addf %90, %89 : vector<1x8xf32>
    %92 = arith.divf %90, %91 : vector<1x8xf32>
    %c0_36 = arith.constant 0 : index
    %c0_37 = arith.constant 0 : index
    %c0_38 = arith.constant 0 : index
    %93 = vector.load %arg3[%c0_36, %c0_37, %c0_38] : memref<1x1x8xf32, #tpu.memory_space<vmem>>, vector<1x1x8xf32>
    %94 = vector.shape_cast %93 : vector<1x1x8xf32> to vector<1x8xf32>
    %95 = vector.shape_cast %92 : vector<1x8xf32> to vector<1x1x8xf32>
    tpu.vector_store %arg3[%c0_36, %c0_37, %c0_38], %95 {strides = array<i32>} : memref<1x1x8xf32, #tpu.memory_space<vmem>>, vector<1x1x8xf32>,
    return
  }
  func.func @transform_0(%arg0: i32) -> (i32, i32, i32) {
    %c0_i32 = arith.constant 0 : i32
    %c0_i32_0 = arith.constant 0 : i32
    %c0_i32_1 = arith.constant 0 : i32
    return %arg0, %c0_i32, %c0_i32_0 : i32, i32, i32
  }
  func.func @transform_1(%arg0: i32) -> (i32, i32) {
    %c0_i32 = arith.constant 0 : i32
    %c0_i32_0 = arith.constant 0 : i32
    %c0_i32_1 = arith.constant 0 : i32
    return %c0_i32, %c0_i32_0 : i32, i32
  }
  func.func @transform_2(%arg0: i32) -> (i32, i32, i32) {
    %c0_i32 = arith.constant 0 : i32
    %c0_i32_0 = arith.constant 0 : i32
    %c0_i32_1 = arith.constant 0 : i32
    return %arg0, %c0_i32, %c0_i32_0 : i32, i32, i32
  }
}

</mosaic_0001>

<llo_original>
// kernel: tpu_custom_call.1
$region0: #{tpu_custom_call.1}
  #allocation0 [shape = 'u32[]', space=smem, size = 0x4, offset = 0x4, fixed_abs, tag = 'smem constant byte address 0x4 - core index']
  #allocation1 [shape = 'u32[144,128]{1,0:T(1,128)}', space=vmem, size = 0x12000, scoped, tag = 'internal scratch']
  %s0 = inlined_call_operand.vmem [shape: f32[1,8,32], index: 0, kind: input, shape index: {}]
  %s1 = inlined_call_operand.vmem [shape: f32[96,72], index: 1, kind: input, shape index: {}]
  %s2 = inlined_call_operand.hbm [shape: f32[1,1,8], index: 2, kind: output, shape index: {}]
  %s3 = sld [smem:[#allocation0]]
  $region18: #{tpu_custom_call.1} parent=0
    _
  %s5 = ssub.s32 1, %s3
  %s6 = scalar_select 0, %s5, %s3
  $region1: #{tpu_custom_call.1} parent=0
    #allocation2 [shape = 'u8[512]{0}', space=vmem, size = 0x400, scoped, tag = 'output window, operand 0, single buffered']
    #allocation3 [shape = 's32[1]{0}', space=sflag, size = 0x4, scoped, tag = 'scoped memory for tpu_custom_call.1']
    %7 = vsyncpa [#allocation3], 0
    // Predicated region
    $region2: #{tpu_custom_call.1} parent=1 // pred_check
      _
    $region3: #{tpu_custom_call.1} parent=1 // pred_check_branch
      %9 = sbr.rel (0) target = $region5
    $region4: #{tpu_custom_call.1} parent=1 // pred_region
      _
    $region5: #{tpu_custom_call.1} parent=1 // pred_fallthru
      _
    // Predicated region
    $region6: #{tpu_custom_call.1} parent=1 // pred_check
      _
    $region7: #{tpu_custom_call.1} parent=1 // pred_check_branch
      %11 = sbr.rel (0) target = $region9
    $region8: #{tpu_custom_call.1} parent=1 // pred_region
      _
    $region9: #{tpu_custom_call.1} parent=1 // pred_fallthru
      _
    %v12 = vld [vmem:[%s0] sm:$0xff]
    %v13 = vld [vmem:[%s1] sm:$0xff]
    %v14 = vld [vmem:[%s1 + $0x8] sm:$0xff]
    %v15 = vld [vmem:[%s1 + $0x10] sm:$0xff]
    %v16 = vld [vmem:[%s1 + $0x18] sm:$0xff]
    %v17 = vld [vmem:[%s1 + $0x20] sm:$0xff]
    %v18 = vld [vmem:[%s1 + $0x28] sm:$0xff]
    %v19 = vld [vmem:[%s1 + $0x30] sm:$0xff]
    %v20 = vld [vmem:[%s1 + $0x38] sm:$0xff]
    %v21 = vld [vmem:[%s1 + $0x40] sm:$0xff]
    %v22 = vld [vmem:[%s1 + $0x48] sm:$0xff]
    %v23 = vld [vmem:[%s1 + $0x50] sm:$0xff]
    %v24 = vld [vmem:[%s1 + $0x58] sm:$0xff]
    %v25 = vld [vmem:[%s1] sm:$0x1]
    %vm26 = vcmask 261120
    %v28 = vsel %vm26, %v13, 0
    %v31 = vsel %vm26, %v14, 0
    %v34 = vsel %vm26, %v12, 0
    %36 = vmatprep.subr.mxu0 0.0
    %37 = vmatpush1.xpose.msra.mxu0 %v34
    %38 = vmatprep.subr.mxu0 0.0
    %39 = vmatpush1.xpose.msra.mxu0 0.0
    %40 = vmatprep.subr.mxu0 0.0
    %41 = vmatpush1.xpose.msra.mxu0 0.0
    %42 = vmatprep.subr.mxu0 0.0
    %43 = vmatpush1.xpose.msra.mxu0 0.0
    %44 = vmatprep.subr.mxu0 0.0
    %45 = vmatpush1.xpose.msra.mxu0 0.0
    %46 = vmatprep.subr.mxu0 0.0
    %47 = vmatpush1.xpose.msra.mxu0 0.0
    %48 = vmatprep.subr.mxu0 0.0
    %49 = vmatpush1.xpose.msra.mxu0 0.0
    %50 = vmatprep.subr.mxu0 0.0
    %51 = vmatpush1.xpose.msra.mxu0 0.0
    %52 = vmatprep.subr.mxu0 0.0
    %53 = vmatpush1.xpose.msra.mxu0 0.0
    %54 = vmatprep.subr.mxu0 0.0
    %55 = vmatpush1.xpose.msra.mxu0 0.0
    %56 = vmatprep.subr.mxu0 0.0
    %57 = vmatpush1.xpose.msra.mxu0 0.0
    %58 = vmatprep.subr.mxu0 0.0
    %59 = vmatpush1.xpose.msra.mxu0 0.0
    %60 = vmatprep.subr.mxu0 0.0
    %61 = vmatpush1.xpose.msra.mxu0 0.0
    %62 = vmatprep.subr.mxu0 0.0
    %63 = vmatpush1.xpose.msra.mxu0 0.0
    %64 = vmatprep.subr.mxu0 0.0
    %65 = vmatpush1.xpose.msra.mxu0 0.0
    %66 = vmatprep.subr.mxu0 0.0
    %67 = vmatpush1.xpose.msra.mxu0 0.0
    %68 = vmatprep.subr.mxu0 0.0
    %69 = vmatpush1.xpose.msra.mxu0 0.0
    %70 = vmatprep.subr.mxu0 0.0
    %71 = vmatpush1.xpose.msra.mxu0 0.0
    %72 = vmatprep.subr.mxu0 0.0
    %73 = vmatpush1.xpose.msra.mxu0 0.0
    %74 = vmatprep.subr.mxu0 0.0
    %75 = vmatpush1.xpose.msra.mxu0 0.0
    %76 = vmatprep.subr.mxu0 0.0
    %77 = vmatpush1.xpose.msra.mxu0 0.0
    %78 = vmatprep.subr.mxu0 0.0
    %79 = vmatpush1.xpose.msra.mxu0 0.0
    %80 = vmatprep.subr.mxu0 0.0
    %81 = vmatpush1.xpose.msra.mxu0 0.0
    %82 = vmatprep.subr.mxu0 0.0
    %83 = vmatpush1.xpose.msra.mxu0 0.0
    %84 = vmatprep.subr.mxu0 0.0
    %85 = vmatpush1.xpose.msra.mxu0 0.0
    %86 = vmatprep.subr.mxu0 0.0
    %87 = vmatpush1.xpose.msra.mxu0 0.0
    %88 = vmatprep.subr.mxu0 0.0
    %89 = vmatpush1.xpose.msra.mxu0 0.0
    %90 = vmatprep.subr.mxu0 0.0
    %91 = vmatpush1.xpose.msra.mxu0 0.0
    %92 = vmatprep.subr.mxu0 0.0
    %93 = vmatpush1.xpose.msra.mxu0 0.0
    %94 = vmatprep.subr.mxu0 0.0
    %95 = vmatpush1.xpose.msra.mxu0 0.0
    %96 = vmatprep.subr.mxu0 0.0
    %97 = vmatpush1.xpose.msra.mxu0 0.0
    %98 = vmatprep.subr.mxu0 0.0
    %99 = vmatpush1.xpose.msra.mxu0 0.0
    %100 = vmatprep.mubr.f32.mxu0 0.0
    %101 = vmatmul.mubr.f32.gmra.mrb[0].mxu0 %v28
    %v102 = vpop.f32.mrb[0].mxu0
    %v103 = vadd.f32 0.0, %v102
    %v104 = vpop.f32.mrb[0].mxu0
    %105 = vmatprep.mubr.f32.mxu0 0.0
    %106 = vmatmul.mubr.f32.gmra.mrb[0].mxu0 %v31
    %v107 = vpop.f32.mrb[0].mxu0
    %v108 = vadd.f32 0.0, %v107
    %v109 = vpop.f32.mrb[0].mxu0
    %110 = vdwg.mxu0
    %vm111 = vcmask 64512
    %v112 = vsel %vm111, %v103, 0.0
    %113 = vadd.xlane.f32.xlu0 %v112
    %v114 = vpop.xlane.xlu0 %113
    %v115 = vsel %vm111, %v108, 0.0
    %116 = vadd.xlane.f32.xlu0 %v115
    %v117 = vpop.xlane.xlu0 %116
    %v118 = vrcp.pop 8.0
    %v119 = vmul.f32 %v114, %v118
    %v120 = vmul.f32 %v117, %v118
    %v121 = vsub.f32 %v103, %v119
    %v122 = vsub.f32 %v108, %v120
    %v123 = vmul.f32 %v121, %v121
    %v124 = vmul.f32 %v122, %v122
    %v125 = vsel %vm111, %v123, 0.0
    %126 = vadd.xlane.f32.xlu0 %v125
    %v127 = vpop.xlane.xlu0 %126
    %v128 = vsel %vm111, %v124, 0.0
    %129 = vadd.xlane.f32.xlu0 %v128
    %v130 = vpop.xlane.xlu0 %129
    %v131 = vmul.f32 %v127, %v118
    %v132 = vmul.f32 %v130, %v118
    %v133 = vadd.f32 %v131, 1e-05
    %v134 = vadd.f32 %v132, 1e-05
    %v135 = vrsqrt.pop %v133
    %v136 = vrsqrt.pop %v134
    %v137 = vmul.f32 %v121, %v135
    %v138 = vmul.f32 %v122, %v136
    %139 = vset.pattern.permute.xlu0 64
    %140 = vperm.xlu0 %139, %v13
    %v141 = vpop.permute.xlu0 %140
    %143 = vset.pattern.permute.xlu0 64
    %144 = vperm.xlu0 %143, %v14
    %v145 = vpop.permute.xlu0 %144
    %v147 = vmul.f32 %v137, %v141
    %v148 = vmul.f32 %v138, %v145
    %149 = vset.pattern.permute.xlu0 65
    %150 = vperm.xlu0 %149, %v13
    %v151 = vpop.permute.xlu0 %150
    %153 = vset.pattern.permute.xlu0 65
    %154 = vperm.xlu0 %153, %v14
    %v155 = vpop.permute.xlu0 %154
    %v157 = vadd.f32 %v147, %v151
    %v158 = vadd.f32 %v148, %v155
    %v159 = vmax.f32 %v157, 0.0
    %v160 = vmax.f32 %v158, 0.0
    %vm161 = vcmask 130048
    %v163 = vsel %vm161, %v15, 0
    %v166 = vsel %vm161, %v16, 0
    %v169 = vsel %vm161, %v17, 0
    %v172 = vsel %vm161, %v18, 0
    %v175 = vsel %vm161, %v19, 0
    %v178 = vsel %vm161, %v20, 0
    %v181 = vsel %vm161, %v21, 0
    %v184 = vsel %vm161, %v22, 0
    %186 = vmatprep.subr.mxu0 0.0
    %187 = vmatpush1.msra.mxu0 %v159
    %188 = vmatprep.subr.mxu0 0.0
    %189 = vmatpush1.msra.mxu0 %v160
    %190 = vmatprep.subr.mxu0 0.0
    %191 = vmatpush1.msra.mxu0 0.0
    %192 = vmatprep.subr.mxu0 0.0
    %193 = vmatpush1.msra.mxu0 0.0
    %194 = vmatprep.subr.mxu0 0.0
    %195 = vmatpush1.msra.mxu0 0.0
    %196 = vmatprep.subr.mxu0 0.0
    %197 = vmatpush1.msra.mxu0 0.0
    %198 = vmatprep.subr.mxu0 0.0
    %199 = vmatpush1.msra.mxu0 0.0
    %200 = vmatprep.subr.mxu0 0.0
    %201 = vmatpush1.msra.mxu0 0.0
    %202 = vmatprep.subr.mxu0 0.0
    %203 = vmatpush1.msra.mxu0 0.0
    %204 = vmatprep.subr.mxu0 0.0
    %205 = vmatpush1.msra.mxu0 0.0
    %206 = vmatprep.subr.mxu0 0.0
    %207 = vmatpush1.msra.mxu0 0.0
    %208 = vmatprep.subr.mxu0 0.0
    %209 = vmatpush1.msra.mxu0 0.0
    %210 = vmatprep.subr.mxu0 0.0
    %211 = vmatpush1.msra.mxu0 0.0
    %212 = vmatprep.subr.mxu0 0.0
    %213 = vmatpush1.msra.mxu0 0.0
    %214 = vmatprep.subr.mxu0 0.0
    %215 = vmatpush1.msra.mxu0 0.0
    %216 = vmatprep.subr.mxu0 0.0
    %217 = vmatpush1.msra.mxu0 0.0
    %218 = vmatprep.subr.mxu0 0.0
    %219 = vmatpush1.msra.mxu0 0.0
    %220 = vmatprep.subr.mxu0 0.0
    %221 = vmatpush1.msra.mxu0 0.0
    %222 = vmatprep.subr.mxu0 0.0
    %223 = vmatpush1.msra.mxu0 0.0
    %224 = vmatprep.subr.mxu0 0.0
    %225 = vmatpush1.msra.mxu0 0.0
    %226 = vmatprep.subr.mxu0 0.0
    %227 = vmatpush1.msra.mxu0 0.0
    %228 = vmatprep.subr.mxu0 0.0
    %229 = vmatpush1.msra.mxu0 0.0
    %230 = vmatprep.subr.mxu0 0.0
    %231 = vmatpush1.msra.mxu0 0.0
    %232 = vmatprep.subr.mxu0 0.0
    %233 = vmatpush1.msra.mxu0 0.0
    %234 = vmatprep.subr.mxu0 0.0
    %235 = vmatpush1.msra.mxu0 0.0
    %236 = vmatprep.subr.mxu0 0.0
    %237 = vmatpush1.msra.mxu0 0.0
    %238 = vmatprep.subr.mxu0 0.0
    %239 = vmatpush1.msra.mxu0 0.0
    %240 = vmatprep.subr.mxu0 0.0
    %241 = vmatpush1.msra.mxu0 0.0
    %242 = vmatprep.subr.mxu0 0.0
    %243 = vmatpush1.msra.mxu0 0.0
    %244 = vmatprep.subr.mxu0 0.0
    %245 = vmatpush1.msra.mxu0 0.0
    %246 = vmatprep.subr.mxu0 0.0
    %247 = vmatpush1.msra.mxu0 0.0
    %248 = vmatprep.subr.mxu0 0.0
    %249 = vmatpush1.msra.mxu0 0.0
    %250 = vmatprep.mubr.f32.mxu0 0.0
    %251 = vmatmul.mubr.f32.gmra.mrb[0].mxu0 %v163
    %v252 = vpop.f32.mrb[0].mxu0
    %v253 = vadd.f32 0.0, %v252
    %v254 = vpop.f32.mrb[0].mxu0
    %255 = vmatprep.mubr.f32.mxu0 0.0
    %256 = vmatmul.mubr.f32.gmra.mrb[0].mxu0 %v166
    %v257 = vpop.f32.mrb[0].mxu0
    %v258 = vadd.f32 0.0, %v257
    %v259 = vpop.f32.mrb[0].mxu0
    %260 = vmatprep.mubr.f32.mxu0 0.0
    %261 = vmatmul.mubr.f32.gmra.mrb[0].mxu0 %v169
    %v262 = vpop.f32.mrb[0].mxu0
    %v263 = vadd.f32 0.0, %v262
    %v264 = vpop.f32.mrb[0].mxu0
    %265 = vmatprep.mubr.f32.mxu0 0.0
    %266 = vmatmul.mubr.f32.gmra.mrb[0].mxu0 %v172
    %v267 = vpop.f32.mrb[0].mxu0
    %v268 = vadd.f32 0.0, %v267
    %v269 = vpop.f32.mrb[0].mxu0
    %270 = vmatprep.mubr.f32.mxu0 0.0
    %271 = vmatmul.mubr.f32.gmra.mrb[0].mxu0 %v175
    %v272 = vpop.f32.mrb[0].mxu0
    %v273 = vadd.f32 0.0, %v272
    %v274 = vpop.f32.mrb[0].mxu0
    %275 = vmatprep.mubr.f32.mxu0 0.0
    %276 = vmatmul.mubr.f32.gmra.mrb[0].mxu0 %v178
    %v277 = vpop.f32.mrb[0].mxu0
    %v278 = vadd.f32 0.0, %v277
    %v279 = vpop.f32.mrb[0].mxu0
    %280 = vmatprep.mubr.f32.mxu0 0.0
    %281 = vmatmul.mubr.f32.gmra.mrb[0].mxu0 %v181
    %v282 = vpop.f32.mrb[0].mxu0
    %v283 = vadd.f32 0.0, %v282
    %v284 = vpop.f32.mrb[0].mxu0
    %285 = vmatprep.mubr.f32.mxu0 0.0
    %286 = vmatmul.mubr.f32.gmra.mrb[0].mxu0 %v184
    %v287 = vpop.f32.mrb[0].mxu0
    %v288 = vadd.f32 0.0, %v287
    %v289 = vpop.f32.mrb[0].mxu0
    %290 = vdwg.mxu0
    %v291 = vsel %vm111, %v253, 0.0
    %292 = vadd.xlane.f32.xlu0 %v291
    %v293 = vpop.xlane.xlu0 %292
    %v294 = vsel %vm111, %v258, 0.0
    %295 = vadd.xlane.f32.xlu0 %v294
    %v296 = vpop.xlane.xlu0 %295
    %v297 = vsel %vm111, %v263, 0.0
    %298 = vadd.xlane.f32.xlu0 %v297
    %v299 = vpop.xlane.xlu0 %298
    %v300 = vsel %vm111, %v268, 0.0
    %301 = vadd.xlane.f32.xlu0 %v300
    %v302 = vpop.xlane.xlu0 %301
    %v303 = vsel %vm111, %v273, 0.0
    %304 = vadd.xlane.f32.xlu0 %v303
    %v305 = vpop.xlane.xlu0 %304
    %v306 = vsel %vm111, %v278, 0.0
    %307 = vadd.xlane.f32.xlu0 %v306
    %v308 = vpop.xlane.xlu0 %307
    %v309 = vsel %vm111, %v283, 0.0
    %310 = vadd.xlane.f32.xlu0 %v309
    %v311 = vpop.xlane.xlu0 %310
    %v312 = vsel %vm111, %v288, 0.0
    %313 = vadd.xlane.f32.xlu0 %v312
    %v314 = vpop.xlane.xlu0 %313
    %v315 = vmul.f32 %v293, %v118
    %v316 = vmul.f32 %v296, %v118
    %v317 = vmul.f32 %v299, %v118
    %v318 = vmul.f32 %v302, %v118
    %v319 = vmul.f32 %v305, %v118
    %v320 = vmul.f32 %v308, %v118
    %v321 = vmul.f32 %v311, %v118
    %v322 = vmul.f32 %v314, %v118
    %v323 = vsub.f32 %v253, %v315
    %v324 = vsub.f32 %v258, %v316
    %v325 = vsub.f32 %v263, %v317
    %v326 = vsub.f32 %v268, %v318
    %v327 = vsub.f32 %v273, %v319
    %v328 = vsub.f32 %v278, %v320
    %v329 = vsub.f32 %v283, %v321
    %v330 = vsub.f32 %v288, %v322
    %v331 = vmul.f32 %v323, %v323
    %v332 = vmul.f32 %v324, %v324
    %v333 = vmul.f32 %v325, %v325
    %v334 = vmul.f32 %v326, %v326
    %v335 = vmul.f32 %v327, %v327
    %v336 = vmul.f32 %v328, %v328
    %v337 = vmul.f32 %v329, %v329
    %v338 = vmul.f32 %v330, %v330
    %v339 = vsel %vm111, %v331, 0.0
    %340 = vadd.xlane.f32.xlu0 %v339
    %v341 = vpop.xlane.xlu0 %340
    %v342 = vsel %vm111, %v332, 0.0
    %343 = vadd.xlane.f32.xlu0 %v342
    %v344 = vpop.xlane.xlu0 %343
    %v345 = vsel %vm111, %v333, 0.0
    %346 = vadd.xlane.f32.xlu0 %v345
    %v347 = vpop.xlane.xlu0 %346
    %v348 = vsel %vm111, %v334, 0.0
    %349 = vadd.xlane.f32.xlu0 %v348
    %v350 = vpop.xlane.xlu0 %349
    %v351 = vsel %vm111, %v335, 0.0
    %352 = vadd.xlane.f32.xlu0 %v351
    %v353 = vpop.xlane.xlu0 %352
    %v354 = vsel %vm111, %v336, 0.0
    %355 = vadd.xlane.f32.xlu0 %v354
    %v356 = vpop.xlane.xlu0 %355
    %v357 = vsel %vm111, %v337, 0.0
    %358 = vadd.xlane.f32.xlu0 %v357
    %v359 = vpop.xlane.xlu0 %358
    %v360 = vsel %vm111, %v338, 0.0
    %361 = vadd.xlane.f32.xlu0 %v360
    %v362 = vpop.xlane.xlu0 %361
    %v363 = vmul.f32 %v341, %v118
    %v364 = vmul.f32 %v344, %v118
    %v365 = vmul.f32 %v347, %v118
    %v366 = vmul.f32 %v350, %v118
    %v367 = vmul.f32 %v353, %v118
    %v368 = vmul.f32 %v356, %v118
    %v369 = vmul.f32 %v359, %v118
    %v370 = vmul.f32 %v362, %v118
    %v371 = vadd.f32 %v363, 1e-05
    %v372 = vadd.f32 %v364, 1e-05
    %v373 = vadd.f32 %v365, 1e-05
    %v374 = vadd.f32 %v366, 1e-05
    %v375 = vadd.f32 %v367, 1e-05
    %v376 = vadd.f32 %v368, 1e-05
    %v377 = vadd.f32 %v369, 1e-05
    %v378 = vadd.f32 %v370, 1e-05
    %v379 = vrsqrt.pop %v371
    %v380 = vrsqrt.pop %v372
    %v381 = vrsqrt.pop %v373
    %v382 = vrsqrt.pop %v374
    %v383 = vrsqrt.pop %v375
    %v384 = vrsqrt.pop %v376
    %v385 = vrsqrt.pop %v377
    %v386 = vrsqrt.pop %v378
    %v387 = vmul.f32 %v323, %v379
    %v388 = vmul.f32 %v324, %v380
    %v389 = vmul.f32 %v325, %v381
    %v390 = vmul.f32 %v326, %v382
    %v391 = vmul.f32 %v327, %v383
    %v392 = vmul.f32 %v328, %v384
    %v393 = vmul.f32 %v329, %v385
    %v394 = vmul.f32 %v330, %v386
    %395 = vset.pattern.permute.xlu0 66
    %396 = vperm.xlu0 %395, %v13
    %v397 = vpop.permute.xlu0 %396
    %399 = vset.pattern.permute.xlu0 66
    %400 = vperm.xlu0 %399, %v14
    %v401 = vpop.permute.xlu0 %400
    %403 = vset.pattern.permute.xlu0 66
    %404 = vperm.xlu0 %403, %v15
    %v405 = vpop.permute.xlu0 %404
    %407 = vset.pattern.permute.xlu0 66
    %408 = vperm.xlu0 %407, %v16
    %v409 = vpop.permute.xlu0 %408
    %411 = vset.pattern.permute.xlu0 66
    %412 = vperm.xlu0 %411, %v17
    %v413 = vpop.permute.xlu0 %412
    %415 = vset.pattern.permute.xlu0 66
    %416 = vperm.xlu0 %415, %v18
    %v417 = vpop.permute.xlu0 %416
    %419 = vset.pattern.permute.xlu0 66
    %420 = vperm.xlu0 %419, %v19
    %v421 = vpop.permute.xlu0 %420
    %423 = vset.pattern.permute.xlu0 66
    %424 = vperm.xlu0 %423, %v20
    %v425 = vpop.permute.xlu0 %424
    %v427 = vmul.f32 %v387, %v397
    %v428 = vmul.f32 %v388, %v401
    %v429 = vmul.f32 %v389, %v405
    %v430 = vmul.f32 %v390, %v409
    %v431 = vmul.f32 %v391, %v413
    %v432 = vmul.f32 %v392, %v417
    %v433 = vmul.f32 %v393, %v421
    %v434 = vmul.f32 %v394, %v425
    %435 = vset.pattern.permute.xlu0 67
    %436 = vperm.xlu0 %435, %v13
    %v437 = vpop.permute.xlu0 %436
    %439 = vset.pattern.permute.xlu0 67
    %440 = vperm.xlu0 %439, %v14
    %v441 = vpop.permute.xlu0 %440
    %443 = vset.pattern.permute.xlu0 67
    %444 = vperm.xlu0 %443, %v15
    %v445 = vpop.permute.xlu0 %444
    %447 = vset.pattern.permute.xlu0 67
    %448 = vperm.xlu0 %447, %v16
    %v449 = vpop.permute.xlu0 %448
    %451 = vset.pattern.permute.xlu0 67
    %452 = vperm.xlu0 %451, %v17
    %v453 = vpop.permute.xlu0 %452
    %455 = vset.pattern.permute.xlu0 67
    %456 = vperm.xlu0 %455, %v18
    %v457 = vpop.permute.xlu0 %456
    %459 = vset.pattern.permute.xlu0 67
    %460 = vperm.xlu0 %459, %v19
    %v461 = vpop.permute.xlu0 %460
    %463 = vset.pattern.permute.xlu0 67
    %464 = vperm.xlu0 %463, %v20
    %v465 = vpop.permute.xlu0 %464
    %v467 = vadd.f32 %v427, %v437
    %v468 = vadd.f32 %v428, %v441
    %v469 = vadd.f32 %v429, %v445
    %v470 = vadd.f32 %v430, %v449
    %v471 = vadd.f32 %v431, %v453
    %v472 = vadd.f32 %v432, %v457
    %v473 = vadd.f32 %v433, %v461
    %v474 = vadd.f32 %v434, %v465
    %v475 = vmax.f32 %v467, 0.0
    %v476 = vmax.f32 %v468, 0.0
    %v477 = vmax.f32 %v469, 0.0
    %v478 = vmax.f32 %v470, 0.0
    %v479 = vmax.f32 %v471, 0.0
    %v480 = vmax.f32 %v472, 0.0
    %v481 = vmax.f32 %v473, 0.0
    %v482 = vmax.f32 %v474, 0.0
    %vm483 = vcmask 523264
    %v485 = vsel %vm483, %v23, 0
    %v488 = vsel %vm483, %v24, 0
    %490 = vmatprep.subr.mxu0 0.0
    %491 = vmatpush1.msra.mxu0 %v475
    %492 = vmatprep.subr.mxu0 0.0
    %493 = vmatpush1.msra.mxu0 %v476
    %494 = vmatprep.subr.mxu0 0.0
    %495 = vmatpush1.msra.mxu0 %v477
    %496 = vmatprep.subr.mxu0 0.0
    %497 = vmatpush1.msra.mxu0 %v478
    %498 = vmatprep.subr.mxu0 0.0
    %499 = vmatpush1.msra.mxu0 %v479
    %500 = vmatprep.subr.mxu0 0.0
    %501 = vmatpush1.msra.mxu0 %v480
    %502 = vmatprep.subr.mxu0 0.0
    %503 = vmatpush1.msra.mxu0 %v481
    %504 = vmatprep.subr.mxu0 0.0
    %505 = vmatpush1.msra.mxu0 %v482
    %506 = vmatprep.subr.mxu0 0.0
    %507 = vmatpush1.msra.mxu0 0.0
    %508 = vmatprep.subr.mxu0 0.0
    %509 = vmatpush1.msra.mxu0 0.0
    %510 = vmatprep.subr.mxu0 0.0
    %511 = vmatpush1.msra.mxu0 0.0
    %512 = vmatprep.subr.mxu0 0.0
    %513 = vmatpush1.msra.mxu0 0.0
    %514 = vmatprep.subr.mxu0 0.0
    %515 = vmatpush1.msra.mxu0 0.0
    %516 = vmatprep.subr.mxu0 0.0
    %517 = vmatpush1.msra.mxu0 0.0
    %518 = vmatprep.subr.mxu0 0.0
    %519 = vmatpush1.msra.mxu0 0.0
    %520 = vmatprep.subr.mxu0 0.0
    %521 = vmatpush1.msra.mxu0 0.0
    %522 = vmatprep.subr.mxu0 0.0
    %523 = vmatpush1.msra.mxu0 0.0
    %524 = vmatprep.subr.mxu0 0.0
    %525 = vmatpush1.msra.mxu0 0.0
    %526 = vmatprep.subr.mxu0 0.0
    %527 = vmatpush1.msra.mxu0 0.0
    %528 = vmatprep.subr.mxu0 0.0
    %529 = vmatpush1.msra.mxu0 0.0
    %530 = vmatprep.subr.mxu0 0.0
    %531 = vmatpush1.msra.mxu0 0.0
    %532 = vmatprep.subr.mxu0 0.0
    %533 = vmatpush1.msra.mxu0 0.0
    %534 = vmatprep.subr.mxu0 0.0
    %535 = vmatpush1.msra.mxu0 0.0
    %536 = vmatprep.subr.mxu0 0.0
    %537 = vmatpush1.msra.mxu0 0.0
    %538 = vmatprep.subr.mxu0 0.0
    %539 = vmatpush1.msra.mxu0 0.0
    %540 = vmatprep.subr.mxu0 0.0
    %541 = vmatpush1.msra.mxu0 0.0
    %542 = vmatprep.subr.mxu0 0.0
    %543 = vmatpush1.msra.mxu0 0.0
    %544 = vmatprep.subr.mxu0 0.0
    %545 = vmatpush1.msra.mxu0 0.0
    %546 = vmatprep.subr.mxu0 0.0
    %547 = vmatpush1.msra.mxu0 0.0
    %548 = vmatprep.subr.mxu0 0.0
    %549 = vmatpush1.msra.mxu0 0.0
    %550 = vmatprep.subr.mxu0 0.0
    %551 = vmatpush1.msra.mxu0 0.0
    %552 = vmatprep.subr.mxu0 0.0
    %553 = vmatpush1.msra.mxu0 0.0
    %554 = vmatprep.mubr.f32.mxu0 0.0
    %555 = vmatmul.mubr.f32.gmra.mrb[0].mxu0 %v485
    %v556 = vpop.f32.mrb[0].mxu0
    %v557 = vadd.f32 0.0, %v556
    %v558 = vpop.f32.mrb[0].mxu0
    %559 = vmatprep.mubr.f32.mxu0 0.0
    %560 = vmatmul.mubr.f32.gmra.mrb[0].mxu0 %v488
    %v561 = vpop.f32.mrb[0].mxu0
    %v562 = vadd.f32 0.0, %v561
    %v563 = vpop.f32.mrb[0].mxu0
    %564 = vdwg.mxu0
    %v565 = vsel %vm111, %v557, 0.0
    %566 = vadd.xlane.f32.xlu0 %v565
    %v567 = vpop.xlane.xlu0 %566
    %v568 = vsel %vm111, %v562, 0.0
    %569 = vadd.xlane.f32.xlu0 %v568
    %v570 = vpop.xlane.xlu0 %569
    %v571 = vmul.f32 %v567, %v118
    %v572 = vmul.f32 %v570, %v118
    %v573 = vsub.f32 %v557, %v571
    %v574 = vsub.f32 %v562, %v572
    %v575 = vmul.f32 %v573, %v573
    %v576 = vmul.f32 %v574, %v574
    %v577 = vsel %vm111, %v575, 0.0
    %578 = vadd.xlane.f32.xlu0 %v577
    %v579 = vpop.xlane.xlu0 %578
    %v580 = vsel %vm111, %v576, 0.0
    %581 = vadd.xlane.f32.xlu0 %v580
    %v582 = vpop.xlane.xlu0 %581
    %v583 = vmul.f32 %v579, %v118
    %v584 = vmul.f32 %v582, %v118
    %v585 = vadd.f32 %v583, 1e-05
    %v586 = vadd.f32 %v584, 1e-05
    %v587 = vrsqrt.pop %v585
    %v588 = vrsqrt.pop %v586
    %v589 = vmul.f32 %v573, %v587
    %v590 = vmul.f32 %v574, %v588
    %591 = vset.pattern.permute.xlu0 68
    %592 = vperm.xlu0 %591, %v13
    %v593 = vpop.permute.xlu0 %592
    %595 = vset.pattern.permute.xlu0 68
    %596 = vperm.xlu0 %595, %v14
    %v597 = vpop.permute.xlu0 %596
    %v599 = vmul.f32 %v589, %v593
    %v600 = vmul.f32 %v590, %v597
    %601 = vset.pattern.permute.xlu0 69
    %602 = vperm.xlu0 %601, %v13
    %v603 = vpop.permute.xlu0 %602
    %605 = vset.pattern.permute.xlu0 69
    %606 = vperm.xlu0 %605, %v14
    %v607 = vpop.permute.xlu0 %606
    %v609 = vadd.f32 %v599, %v603
    %v610 = vadd.f32 %v600, %v607
    %v611 = vmax.f32 %v609, 0.0
    %v612 = vmax.f32 %v610, 0.0
    %613 = vset.pattern.permute.xlu0 70
    %614 = vperm.xlu0 %613, %v13
    %v615 = vpop.permute.xlu0 %614
    %617 = vset.pattern.permute.xlu0 70
    %618 = vperm.xlu0 %617, %v14
    %v619 = vpop.permute.xlu0 %618
    %v621 = vmul.f32 %v611, %v615
    %v622 = vmul.f32 %v612, %v619
    %v623 = vsel %vm111, %v621, 0.0
    %v624 = vsel %vm111, %v622, 0.0
    %v625 = vadd.f32 %v623, %v624
    %v626 = vrot.slane %v625, 4
    %v627 = vadd.f32 %v625, %v626
    %v628 = vrot.slane %v627, 2
    %v629 = vadd.f32 %v627, %v628
    %v630 = vrot.slane %v629, 1
    %v631 = vadd.f32 %v629, %v630
    %633 = vset.pattern.permute.xlu0 71
    %634 = vperm.xlu0 %633, %v25
    %v635 = vpop.permute.xlu0 %634
    %v637 = vadd.f32 %v631, %v635
    %v638 = vxor.u32 %v637, 2147483648
    %v639 = vmul.f32 %v638, 1.442695
    %v640 = vpow.pop %v639
    %v641 = vadd.f32 %v640, 1.0
    %v642 = vrcp.pop %v641
    %v643 = vmul.f32 1.0, %v642
    %vm644 = vcmask 57344
    %645 = vst.msk [vmem:[#allocation2] sm:$0x1] %vm644, %v643
    // Predicated region
    $region10: #{tpu_custom_call.1} parent=1 // pred_check
      _
    $region11: #{tpu_custom_call.1} parent=1 // pred_check_branch
      %647 = sbr.rel (0) target = $region13
    $region12: #{tpu_custom_call.1} parent=1 // pred_region
      %s649 = ssub.s32 16, 16
      %650 = vsyncadd [#allocation3], %s649
      %s652 = sshll.u32 [#allocation2], 4
      %s653 = int_to_ptr.vmem [resolvable:$true] %s652
      %655 = dma.vmem_to_hbm [thread:$0]  %s653, 16, %s2, [#allocation3]
    $region13: #{tpu_custom_call.1} parent=1 // pred_fallthru
      _
    // Predicated region
    $region14: #{tpu_custom_call.1} parent=1 // pred_check
      _
    $region15: #{tpu_custom_call.1} parent=1 // pred_check_branch
      %657 = sbr.rel (0) target = $region17
    $region16: #{tpu_custom_call.1} parent=1 // pred_region
      %658 = dma.done [#allocation3], 16
    $region17: #{tpu_custom_call.1} parent=1 // pred_fallthru
      _
    %659 = vsyncpa [#allocation3], 1

</llo_original>
